<compile_context>
chip_gen: v5e
topology: v5e:2x2
jax: 0.10.0
libtpu: 0.0.40
codegen_flags: <defaults>
</compile_context>

<pallas_src>
import jax
import jax.numpy as jnp
from jax.experimental import pallas as pl
from jax.experimental.pallas import tpu as pltpu

_HIDDEN = 128
_LANE = 128


def _mlp_kernel(x_ref, w1_ref, b1_ref, w2_ref, b2_ref, o_ref):
    # Layer 1: sigmoid(x @ W1 + b1)  -- MXU matmul, f32 accumulate, f32 epilogue.
    h = jnp.dot(x_ref[...], w1_ref[...], preferred_element_type=jnp.float32)
    h = jax.nn.sigmoid(h + b1_ref[...])
    # Layer 2: sigmoid(h @ W2 + b2)  -- h cast back to matmul dtype for the MXU.
    o = jnp.dot(h.astype(w2_ref.dtype), w2_ref[...],
                preferred_element_type=jnp.float32)
    o_ref[...] = jax.nn.sigmoid(o + b2_ref[...]).astype(o_ref.dtype)


def _round_up(n, m):
    return ((n + m - 1) // m) * m


def multiclass_classifier_forward(x, w1, b1, w2, b2, *, use_bf16=True,
                                  tm_max=256):
    """Forward pass of MultiClassClassifier.

    x:  (B, D) float32
    w1: (128, D) PyTorch-layout fc weight ; b1: (128,)
    w2: (C, 128) PyTorch-layout fc2 weight; b2: (C,)
    returns (B, C) float32 = sigmoid(sigmoid(x @ w1.T + b1) @ w2.T + b2)
    """
    B, D = x.shape
    H = w1.shape[0]
    C = w2.shape[0]
    assert H == _HIDDEN and w2.shape[1] == H and w1.shape[1] == D

    mm_dtype = jnp.bfloat16 if use_bf16 else jnp.float32

    # --- pad the classes dim to a lane-dense multiple of 128 (zero columns) ---
    C_pad = _round_up(max(C, _LANE), _LANE)
    w2_t = jnp.zeros((H, C_pad), mm_dtype).at[:, :C].set(w2.T.astype(mm_dtype))
    b2_p = jnp.zeros((1, C_pad), jnp.float32).at[:, :C].set(
        b2.astype(jnp.float32))

    w1_t = w1.T.astype(mm_dtype)                       # (D, H)
    b1_p = b1.reshape(1, H).astype(jnp.float32)        # (1, H)

    # --- tile over batch; pad B up to a multiple of the tile ---
    # Tile is a multiple of 16 (bf16 sublane packing) and capped at tm_max so
    # tiles stay small in VMEM (safe on v7x's 64 MiB VMEM as well).
    TM = min(tm_max, _round_up(B, 16))
    B_pad = _round_up(B, TM)
    x_p = x.astype(mm_dtype)
    if B_pad != B:
        x_p = jnp.zeros((B_pad, D), mm_dtype).at[:B].set(x_p)

    out = pl.pallas_call(
        _mlp_kernel,
        out_shape=jax.ShapeDtypeStruct((B_pad, C_pad), jnp.float32),
        grid=(B_pad // TM,),
        in_specs=[
            pl.BlockSpec((TM, D), lambda i: (i, 0)),       # x tile, pipelined
            pl.BlockSpec((D, H), lambda i: (0, 0)),        # W1 resident
            pl.BlockSpec((1, H), lambda i: (0, 0)),        # b1 resident
            pl.BlockSpec((H, C_pad), lambda i: (0, 0)),    # W2 resident
            pl.BlockSpec((1, C_pad), lambda i: (0, 0)),    # b2 resident
        ],
        out_specs=pl.BlockSpec((TM, C_pad), lambda i: (i, 0)),
        compiler_params=pltpu.CompilerParams(
            dimension_semantics=("parallel",)),
    )(x_p, w1_t, b1_p, w2_t, b2_p)

    # Slice off batch padding and the zero-padded class columns (which would
    # otherwise read back as sigmoid(0) = 0.5).
    return out[:B, :C]


def init_params(key, input_dim, num_classes, hidden=_HIDDEN):
    """Deterministic init mimicking nn.Linear default U[-1/sqrt(fan_in), +]."""
    k1, k2, k3, k4 = jax.random.split(key, 4)
    bnd1 = 1.0 / jnp.sqrt(jnp.float32(input_dim))
    bnd2 = 1.0 / jnp.sqrt(jnp.float32(hidden))
    # Stored in PyTorch (out_features, in_features) layout.
    w1 = jax.random.uniform(k1, (hidden, input_dim), jnp.float32, -bnd1, bnd1)
    b1 = jax.random.uniform(k2, (hidden,), jnp.float32, -bnd1, bnd1)
    w2 = jax.random.uniform(k3, (num_classes, hidden), jnp.float32, -bnd2, bnd2)
    b2 = jax.random.uniform(k4, (num_classes,), jnp.float32, -bnd2, bnd2)
    return w1, b1, w2, b2


if __name__ == "__main__":
    batch = 8
    input_dim = 32
    num_classes = 8

    key = jax.random.PRNGKey(0)
    kx, kp = jax.random.split(key)
    x = jax.random.normal(kx, (batch, input_dim), jnp.float32)
    w1, b1, w2, b2 = init_params(kp, input_dim, num_classes)

    # Pure-JAX reference of the PyTorch forward (f32 throughout).
    ref = jax.nn.sigmoid(jax.nn.sigmoid(x @ w1.T + b1) @ w2.T + b2)

    # 1) f32 operand path: must match the reference tightly.
    out_f32 = jax.block_until_ready(
        multiclass_classifier_forward(x, w1, b1, w2, b2, use_bf16=False))
    assert out_f32.shape == (batch, num_classes)
    assert jnp.allclose(out_f32, ref, atol=1e-5, rtol=1e-5)

    # 2) bf16 matmul-operand path (default / perf config): loose tolerance.
    out_bf16 = jax.block_until_ready(
        multiclass_classifier_forward(x, w1, b1, w2, b2, use_bf16=True))
    assert out_bf16.shape == (batch, num_classes)
    assert jnp.allclose(out_bf16, ref, atol=2e-2, rtol=2e-2)

    print("KERNEL_OK")
</pallas_src>

<mosaic_0001>
module attributes {stable_mosaic.version = 11 : i64} {
  func.func @_mlp_kernel(%arg0: i32, %arg1: memref<16x32xf32, #tpu.memory_space<vmem>>, %arg2: memref<32x128xf32, #tpu.memory_space<vmem>>, %arg3: memref<1x128xf32, #tpu.memory_space<vmem>>, %arg4: memref<128x128xf32, #tpu.memory_space<vmem>>, %arg5: memref<1x128xf32, #tpu.memory_space<vmem>>, %arg6: memref<16x128xf32, #tpu.memory_space<vmem>>) attributes {dimension_semantics = [#tpu.dimension_semantics<parallel>], iteration_bounds = array<i64: 1>, scalar_prefetch = 0 : i64, scratch_operands = 0 : i64, tpu.core_type = #tpu.core_type<tc>, window_params = [{transform_indices = @transform_0, window_bounds = array<i64: 16, 32>}, {pipeline_mode = #tpu.pipeline_mode<synchronous>, transform_indices = @transform_1, window_bounds = array<i64: 32, 128>}, {pipeline_mode = #tpu.pipeline_mode<synchronous>, transform_indices = @transform_2, window_bounds = array<i64: 1, 128>}, {pipeline_mode = #tpu.pipeline_mode<synchronous>, transform_indices = @transform_3, window_bounds = array<i64: 128, 128>}, {pipeline_mode = #tpu.pipeline_mode<synchronous>, transform_indices = @transform_4, window_bounds = array<i64: 1, 128>}, {transform_indices = @transform_5, window_bounds = array<i64: 16, 128>}]} {
    %c0 = arith.constant 0 : index
    %c0_0 = arith.constant 0 : index
    %0 = vector.load %arg1[%c0, %c0_0] : memref<16x32xf32, #tpu.memory_space<vmem>>, vector<16x32xf32>
    %c0_1 = arith.constant 0 : index
    %c0_2 = arith.constant 0 : index
    %1 = vector.load %arg2[%c0_1, %c0_2] : memref<32x128xf32, #tpu.memory_space<vmem>>, vector<32x128xf32>
    %cst = arith.constant dense<0.000000e+00> : vector<16x128xf32>
    %2 = tpu.matmul %0, %1, %cst {dimension_numbers = #tpu.dot_dimension_numbers<[1], [0], [0], [1], [0, 0, 1, 1], [], []>} : vector<16x32xf32>, vector<32x128xf32>, vector<16x128xf32> -> vector<16x128xf32>
    %c0_3 = arith.constant 0 : index
    %c0_4 = arith.constant 0 : index
    %3 = vector.load %arg3[%c0_3, %c0_4] : memref<1x128xf32, #tpu.memory_space<vmem>>, vector<1x128xf32>
    %4 = vector.broadcast %3 : vector<1x128xf32> to vector<16x128xf32>
    %5 = arith.addf %2, %4 : vector<16x128xf32>
    %6 = arith.negf %5 : vector<16x128xf32>
    %7 = math.exp %6 : vector<16x128xf32>
    %cst_5 = arith.constant 1.000000e+00 : f32
    %8 = vector.broadcast %cst_5 : f32 to vector<16x128xf32>
    %9 = arith.addf %8, %7 : vector<16x128xf32>
    %10 = arith.divf %8, %9 : vector<16x128xf32>
    %c0_6 = arith.constant 0 : index
    %c0_7 = arith.constant 0 : index
    %11 = vector.load %arg4[%c0_6, %c0_7] : memref<128x128xf32, #tpu.memory_space<vmem>>, vector<128x128xf32>
    %cst_8 = arith.constant dense<0.000000e+00> : vector<16x128xf32>
    %12 = tpu.matmul %10, %11, %cst_8 {dimension_numbers = #tpu.dot_dimension_numbers<[1], [0], [0], [1], [0, 0, 1, 1], [], []>} : vector<16x128xf32>, vector<128x128xf32>, vector<16x128xf32> -> vector<16x128xf32>
    %c0_9 = arith.constant 0 : index
    %c0_10 = arith.constant 0 : index
    %13 = vector.load %arg5[%c0_9, %c0_10] : memref<1x128xf32, #tpu.memory_space<vmem>>, vector<1x128xf32>
    %14 = vector.broadcast %13 : vector<1x128xf32> to vector<16x128xf32>
    %15 = arith.addf %12, %14 : vector<16x128xf32>
    %16 = arith.negf %15 : vector<16x128xf32>
    %17 = math.exp %16 : vector<16x128xf32>
    %cst_11 = arith.constant 1.000000e+00 : f32
    %18 = vector.broadcast %cst_11 : f32 to vector<16x128xf32>
    %19 = arith.addf %18, %17 : vector<16x128xf32>
    %20 = arith.divf %18, %19 : vector<16x128xf32>
    %c0_12 = arith.constant 0 : index
    %c0_13 = arith.constant 0 : index
    %21 = vector.load %arg6[%c0_12, %c0_13] : memref<16x128xf32, #tpu.memory_space<vmem>>, vector<16x128xf32>
    tpu.vector_store %arg6[%c0_12, %c0_13], %20 {strides = array<i32>} : memref<16x128xf32, #tpu.memory_space<vmem>>, vector<16x128xf32>,
    return
  }
  func.func @transform_0(%arg0: i32) -> (i32, i32) {
    %c0_i32 = arith.constant 0 : i32
    %c0_i32_0 = arith.constant 0 : i32
    return %arg0, %c0_i32 : i32, i32
  }
  func.func @transform_1(%arg0: i32) -> (i32, i32) {
    %c0_i32 = arith.constant 0 : i32
    %c0_i32_0 = arith.constant 0 : i32
    %c0_i32_1 = arith.constant 0 : i32
    return %c0_i32, %c0_i32_0 : i32, i32
  }
  func.func @transform_2(%arg0: i32) -> (i32, i32) {
    %c0_i32 = arith.constant 0 : i32
    %c0_i32_0 = arith.constant 0 : i32
    %c0_i32_1 = arith.constant 0 : i32
    return %c0_i32, %c0_i32_0 : i32, i32
  }
  func.func @transform_3(%arg0: i32) -> (i32, i32) {
    %c0_i32 = arith.constant 0 : i32
    %c0_i32_0 = arith.constant 0 : i32
    %c0_i32_1 = arith.constant 0 : i32
    return %c0_i32, %c0_i32_0 : i32, i32
  }
  func.func @transform_4(%arg0: i32) -> (i32, i32) {
    %c0_i32 = arith.constant 0 : i32
    %c0_i32_0 = arith.constant 0 : i32
    %c0_i32_1 = arith.constant 0 : i32
    return %c0_i32, %c0_i32_0 : i32, i32
  }
  func.func @transform_5(%arg0: i32) -> (i32, i32) {
    %c0_i32 = arith.constant 0 : i32
    %c0_i32_0 = arith.constant 0 : i32
    return %arg0, %c0_i32 : i32, i32
  }
}

</mosaic_0001>

<llo_original>
// kernel: tpu_custom_call.1
$region0: #{tpu_custom_call.1}
  #allocation0 [shape = 'u32[]', space=smem, size = 0x4, offset = 0x4, fixed_abs, tag = 'smem constant byte address 0x4 - core index']
  #allocation1 [shape = 'u32[72,128]{1,0:T(1,128)}', space=vmem, size = 0x9000, scoped, tag = 'internal scratch']
  %s0 = inlined_call_operand.hbm [shape: f32[16,32], index: 0, kind: input, shape index: {}]
  %s1 = inlined_call_operand.hbm [shape: f32[32,128], index: 1, kind: input, shape index: {}]
  %s2 = inlined_call_operand.vmem [shape: f32[1,128], index: 2, kind: input, shape index: {}]
  %s3 = inlined_call_operand.hbm [shape: f32[128,128], index: 3, kind: input, shape index: {}]
  %s4 = inlined_call_operand.vmem [shape: f32[1,128], index: 4, kind: input, shape index: {}]
  %s5 = inlined_call_operand.hbm [shape: f32[16,128], index: 5, kind: output, shape index: {}]
  %s6 = sld [smem:[#allocation0]]
  $region42: #{tpu_custom_call.1} parent=0
    _
  %s8 = ssub.s32 1, %s6
  %s9 = scalar_select 0, %s8, %s6
  $region1: #{tpu_custom_call.1} parent=0
    #allocation2 [shape = 'u8[8192]{0}', space=vmem, size = 0x2000, scoped, tag = 'input window, operand 0, single buffered']
    #allocation3 [shape = 's32[1]{0}', space=sflag, size = 0x4, scoped, tag = 'scoped memory for tpu_custom_call.1']
    #allocation4 [shape = 's32[1]{0}', space=sflag, size = 0x4, scoped, tag = 'scoped memory for tpu_custom_call.1']
    #allocation5 [shape = 'u8[16384]{0}', space=vmem, size = 0x4000, scoped, tag = 'input window, operand 1, single buffered']
    #allocation6 [shape = 's32[1]{0}', space=sflag, size = 0x4, scoped, tag = 'scoped memory for tpu_custom_call.1']
    #allocation7 [shape = 'u8[65536]{0}', space=vmem, size = 0x10000, scoped, tag = 'input window, operand 3, single buffered']
    #allocation8 [shape = 'u8[8192]{0}', space=vmem, size = 0x2000, scoped, tag = 'output window, operand 0, single buffered']
    %10 = vsyncpa [#allocation3], 0
    %11 = vsyncpa [#allocation6], 0
    %12 = vsyncpa [#allocation4], 0
    // Predicated region
    $region2: #{tpu_custom_call.1} parent=1 // pred_check
      _
    $region3: #{tpu_custom_call.1} parent=1 // pred_check_branch
      %14 = sbr.rel (0) target = $region5
    $region4: #{tpu_custom_call.1} parent=1 // pred_region
      %16 = vsyncadd [#allocation3], 0
      %s17 = sshll.u32 %s0, 4
      %s18 = int_to_ptr.hbm [resolvable:$true] %s17
      %s19 = sshll.u32 [#allocation2], 4
      %s20 = int_to_ptr.vmem [resolvable:$true] %s19
      %25 = dma.hbm_to_vmem [thread:$0]  %s18, 256, %s20, [#allocation3], 128, 128, 8
    $region5: #{tpu_custom_call.1} parent=1 // pred_fallthru
      _
    // Predicated region
    $region6: #{tpu_custom_call.1} parent=1 // pred_check
      _
    $region7: #{tpu_custom_call.1} parent=1 // pred_check_branch
      %27 = sbr.rel (0) target = $region9
    $region8: #{tpu_custom_call.1} parent=1 // pred_region
      %29 = vsyncadd [#allocation6], 0
      %s30 = sshll.u32 %s1, 4
      %s31 = int_to_ptr.hbm [resolvable:$true] %s30
      %s32 = sshll.u32 [#allocation5], 4
      %s33 = int_to_ptr.vmem [resolvable:$true] %s32
      %38 = dma.hbm_to_vmem [thread:$0]  %s31, 512, %s33, [#allocation6], 128, 128, 8
    $region9: #{tpu_custom_call.1} parent=1 // pred_fallthru
      _
    // Predicated region
    $region10: #{tpu_custom_call.1} parent=1 // pred_check
      _
    $region11: #{tpu_custom_call.1} parent=1 // pred_check_branch
      %40 = sbr.rel (0) target = $region13
    $region12: #{tpu_custom_call.1} parent=1 // pred_region
      _
    $region13: #{tpu_custom_call.1} parent=1 // pred_fallthru
      _
    // Predicated region
    $region14: #{tpu_custom_call.1} parent=1 // pred_check
      _
    $region15: #{tpu_custom_call.1} parent=1 // pred_check_branch
      %42 = sbr.rel (0) target = $region17
    $region16: #{tpu_custom_call.1} parent=1 // pred_region
      %44 = vsyncadd [#allocation6], 0
      %s45 = sshll.u32 %s3, 4
      %s46 = int_to_ptr.hbm [resolvable:$true] %s45
      %s47 = sshll.u32 [#allocation7], 4
      %s48 = int_to_ptr.vmem [resolvable:$true] %s47
      %53 = dma.hbm_to_vmem [thread:$0]  %s46, 2048, %s48, [#allocation6], 128, 128, 8
    $region17: #{tpu_custom_call.1} parent=1 // pred_fallthru
      _
    // Predicated region
    $region18: #{tpu_custom_call.1} parent=1 // pred_check
      _
    $region19: #{tpu_custom_call.1} parent=1 // pred_check_branch
      %55 = sbr.rel (0) target = $region21
    $region20: #{tpu_custom_call.1} parent=1 // pred_region
      _
    $region21: #{tpu_custom_call.1} parent=1 // pred_fallthru
      _
    // Predicated region
    $region22: #{tpu_custom_call.1} parent=1 // pred_check
      _
    $region23: #{tpu_custom_call.1} parent=1 // pred_check_branch
      %57 = sbr.rel (0) target = $region25
    $region24: #{tpu_custom_call.1} parent=1 // pred_region
      %59 = dma.done [#allocation3], 256
    $region25: #{tpu_custom_call.1} parent=1 // pred_fallthru
      _
    // Predicated region
    $region26: #{tpu_custom_call.1} parent=1 // pred_check
      _
    $region27: #{tpu_custom_call.1} parent=1 // pred_check_branch
      %61 = sbr.rel (0) target = $region29
    $region28: #{tpu_custom_call.1} parent=1 // pred_region
      %63 = dma.done [#allocation6], 512
    $region29: #{tpu_custom_call.1} parent=1 // pred_fallthru
      _
    // Predicated region
    $region30: #{tpu_custom_call.1} parent=1 // pred_check
      _
    $region31: #{tpu_custom_call.1} parent=1 // pred_check_branch
      %65 = sbr.rel (0) target = $region33
    $region32: #{tpu_custom_call.1} parent=1 // pred_region
      %67 = dma.done [#allocation6], 2048
    $region33: #{tpu_custom_call.1} parent=1 // pred_fallthru
      _
    %v68 = vld [vmem:[#allocation2] sm:$0xff]
    %v69 = vld [vmem:[#allocation2 + $0x8] sm:$0xff]
    %v70 = vld [vmem:[#allocation5] sm:$0xff]
    %v71 = vld [vmem:[#allocation5 + $0x8] sm:$0xff]
    %v72 = vld [vmem:[#allocation5 + $0x10] sm:$0xff]
    %v73 = vld [vmem:[#allocation5 + $0x18] sm:$0xff]
    %v74 = vld [vmem:[%s2] sm:$0x1]
    %v76 = vperm.slane %v74, 0
    %vm78 = vcmask 261120
    %v80 = vsel %vm78, %v68, 0
    %v83 = vsel %vm78, %v69, 0
    %85 = vmatpush.msra.mxu0 0.0
    %86 = vmatpush.msra.mxu0 0.0
    %87 = vmatpush.msra.mxu0 0.0
    %88 = vmatpush.msra.mxu0 0.0
    %89 = vmatpush.msra.mxu0 0.0
    %90 = vmatpush.msra.mxu0 0.0
    %91 = vmatpush.msra.mxu0 0.0
    %92 = vmatpush.msra.mxu0 0.0
    %93 = vmatpush.msra.mxu0 0.0
    %94 = vmatpush.msra.mxu0 0.0
    %95 = vmatpush.msra.mxu0 0.0
    %96 = vmatpush.msra.mxu0 0.0
    %97 = vmatpush.msra.mxu0 %v73
    %98 = vmatpush.msra.mxu0 %v72
    %99 = vmatpush.msra.mxu0 %v71
    %100 = vmatpush.msra.mxu0 %v70
    %101 = vmatmul.f32.gmra.mxu0 %v80
    %v102 = vpop.f32.mrf.mxu0
    %v103 = vadd.f32 %v76, %v102
    %104 = vmatmul.f32.gmra.mxu0 %v83
    %v105 = vpop.f32.mrf.mxu0
    %v106 = vadd.f32 %v76, %v105
    %107 = vdwg.mxu0
    %v108 = vxor.u32 %v103, 2147483648
    %v109 = vxor.u32 %v106, 2147483648
    %v110 = vmul.f32 %v108, 1.442695
    %v111 = vpow.pop %v110
    %v112 = vmul.f32 %v109, 1.442695
    %v113 = vpow.pop %v112
    %v114 = vadd.f32 %v111, 1.0
    %v115 = vadd.f32 %v113, 1.0
    %v116 = vrcp.pop %v114
    %v117 = vmul.f32 %v114, %v116
    %v118 = vsub.f32 1.0, %v117
    %v119 = vmul.f32 %v116, %v118
    %v120 = vadd.f32 %v116, %v119
    %vm121 = vweird.f32 %v114
    %vm122 = vweird.f32 %v116
    %vm123 = vmor %vm121, %vm122
    %v124 = vsel %vm123, %v116, %v120
    %v125 = vand.u32 2147483647, %v114
    %vm126 = vcmp.eq.f32.partialorder %v125, 8.507059e+37
    %v127 = vand.u32 %v114, 2147483648
    %v128 = vor.u32 1.1754944e-38, %v127
    %v129 = vsel %vm126, %v128, %v124
    %v130 = vmul.f32 1.0, %v129
    %v131 = vrcp.pop %v115
    %v132 = vmul.f32 %v115, %v131
    %v133 = vsub.f32 1.0, %v132
    %v134 = vmul.f32 %v131, %v133
    %v135 = vadd.f32 %v131, %v134
    %vm136 = vweird.f32 %v115
    %vm137 = vweird.f32 %v131
    %vm138 = vmor %vm136, %vm137
    %v139 = vsel %vm138, %v131, %v135
    %v140 = vand.u32 2147483647, %v115
    %vm141 = vcmp.eq.f32.partialorder %v140, 8.507059e+37
    %v142 = vand.u32 %v115, 2147483648
    %v143 = vor.u32 1.1754944e-38, %v142
    %v144 = vsel %vm141, %v143, %v139
    %v145 = vmul.f32 1.0, %v144
    %v146 = vld [vmem:[#allocation7] sm:$0xff]
    %v147 = vld [vmem:[#allocation7 + $0x8] sm:$0xff]
    %v148 = vld [vmem:[#allocation7 + $0x10] sm:$0xff]
    %v149 = vld [vmem:[#allocation7 + $0x18] sm:$0xff]
    %v150 = vld [vmem:[#allocation7 + $0x20] sm:$0xff]
    %v151 = vld [vmem:[#allocation7 + $0x28] sm:$0xff]
    %v152 = vld [vmem:[#allocation7 + $0x30] sm:$0xff]
    %v153 = vld [vmem:[#allocation7 + $0x38] sm:$0xff]
    %v154 = vld [vmem:[#allocation7 + $0x40] sm:$0xff]
    %v155 = vld [vmem:[#allocation7 + $0x48] sm:$0xff]
    %v156 = vld [vmem:[#allocation7 + $0x50] sm:$0xff]
    %v157 = vld [vmem:[#allocation7 + $0x58] sm:$0xff]
    %v158 = vld [vmem:[#allocation7 + $0x60] sm:$0xff]
    %v159 = vld [vmem:[#allocation7 + $0x68] sm:$0xff]
    %v160 = vld [vmem:[#allocation7 + $0x70] sm:$0xff]
    %v161 = vld [vmem:[#allocation7 + $0x78] sm:$0xff]
    %v162 = vld [vmem:[%s4] sm:$0x1]
    %v164 = vperm.slane %v162, 0
    %166 = vmatpush.msra.mxu0 %v161
    %167 = vmatpush.msra.mxu0 %v160
    %168 = vmatpush.msra.mxu0 %v159
    %169 = vmatpush.msra.mxu0 %v158
    %170 = vmatpush.msra.mxu0 %v157
    %171 = vmatpush.msra.mxu0 %v156
    %172 = vmatpush.msra.mxu0 %v155
    %173 = vmatpush.msra.mxu0 %v154
    %174 = vmatpush.msra.mxu0 %v153
    %175 = vmatpush.msra.mxu0 %v152
    %176 = vmatpush.msra.mxu0 %v151
    %177 = vmatpush.msra.mxu0 %v150
    %178 = vmatpush.msra.mxu0 %v149
    %179 = vmatpush.msra.mxu0 %v148
    %180 = vmatpush.msra.mxu0 %v147
    %181 = vmatpush.msra.mxu0 %v146
    %182 = vmatmul.f32.gmra.mxu0 %v130
    %v183 = vpop.f32.mrf.mxu0
    %v184 = vadd.f32 %v164, %v183
    %185 = vmatmul.f32.gmra.mxu0 %v145
    %v186 = vpop.f32.mrf.mxu0
    %v187 = vadd.f32 %v164, %v186
    %188 = vdwg.mxu0
    %v189 = vxor.u32 %v184, 2147483648
    %v190 = vxor.u32 %v187, 2147483648
    %v191 = vmul.f32 %v189, 1.442695
    %v192 = vpow.pop %v191
    %v193 = vmul.f32 %v190, 1.442695
    %v194 = vpow.pop %v193
    %v195 = vadd.f32 %v192, 1.0
    %v196 = vadd.f32 %v194, 1.0
    %v197 = vrcp.pop %v195
    %v198 = vmul.f32 %v195, %v197
    %v199 = vsub.f32 1.0, %v198
    %v200 = vmul.f32 %v197, %v199
    %v201 = vadd.f32 %v197, %v200
    %vm202 = vweird.f32 %v195
    %vm203 = vweird.f32 %v197
    %vm204 = vmor %vm202, %vm203
    %v205 = vsel %vm204, %v197, %v201
    %v206 = vand.u32 2147483647, %v195
    %vm207 = vcmp.eq.f32.partialorder %v206, 8.507059e+37
    %v208 = vand.u32 %v195, 2147483648
    %v209 = vor.u32 1.1754944e-38, %v208
    %v210 = vsel %vm207, %v209, %v205
    %v211 = vmul.f32 1.0, %v210
    %v212 = vrcp.pop %v196
    %v213 = vmul.f32 %v196, %v212
    %v214 = vsub.f32 1.0, %v213
    %v215 = vmul.f32 %v212, %v214
    %v216 = vadd.f32 %v212, %v215
    %vm217 = vweird.f32 %v196
    %vm218 = vweird.f32 %v212
    %vm219 = vmor %vm217, %vm218
    %v220 = vsel %vm219, %v212, %v216
    %v221 = vand.u32 2147483647, %v196
    %vm222 = vcmp.eq.f32.partialorder %v221, 8.507059e+37
    %v223 = vand.u32 %v196, 2147483648
    %v224 = vor.u32 1.1754944e-38, %v223
    %v225 = vsel %vm222, %v224, %v220
    %v226 = vmul.f32 1.0, %v225
    %227 = vst [vmem:[#allocation8] sm:$0xff] %v211
    %228 = vst [vmem:[#allocation8 + $0x8] sm:$0xff] %v226
    // Predicated region
    $region34: #{tpu_custom_call.1} parent=1 // pred_check
      _
    $region35: #{tpu_custom_call.1} parent=1 // pred_check_branch
      %230 = sbr.rel (0) target = $region37
    $region36: #{tpu_custom_call.1} parent=1 // pred_region
      %232 = vsyncadd [#allocation4], 0
      %s233 = sshll.u32 [#allocation8], 4
      %s234 = int_to_ptr.vmem [resolvable:$true] %s233
      %s235 = sshll.u32 %s5, 4
      %s236 = int_to_ptr.hbm [resolvable:$true] %s235
      %241 = dma.vmem_to_hbm [thread:$0]  %s234, 256, %s236, [#allocation4], 128, 128, 8
    $region37: #{tpu_custom_call.1} parent=1 // pred_fallthru
      _
    // Predicated region
    $region38: #{tpu_custom_call.1} parent=1 // pred_check
      _
    $region39: #{tpu_custom_call.1} parent=1 // pred_check_branch
      %243 = sbr.rel (0) target = $region41
    $region40: #{tpu_custom_call.1} parent=1 // pred_region
      %245 = dma.done [#allocation4], 256
    $region41: #{tpu_custom_call.1} parent=1 // pred_fallthru
      _
    %246 = vsyncpa [#allocation3], 1
    %247 = vsyncpa [#allocation6], 1
    %248 = vsyncpa [#allocation4], 1

</llo_original>
